<compile_context>
chip_gen: v6e
topology: v6e:2x2x1
jax: 0.10.0
libtpu: 0.0.40
codegen_flags: <defaults>
</compile_context>

<pallas_src>
import functools

import jax
import jax.numpy as jnp
from jax.experimental import pallas as pl
from jax.experimental.pallas import tpu as pltpu


def _round_up(x, m):
    return ((x + m - 1) // m) * m


def _mlp_kernel(*refs, n_lin):
    """Fused forward for one (tm, K) row-block of the batch.

    refs = (x_ref, w0, b0, w1, b1, ..., o_ref).  Weights/biases are whole
    arrays in VMEM.  ReLU is fused after every layer but the last; all matmul
    accumulation is f32 on the MXU.
    """
    x_ref = refs[0]
    o_ref = refs[-1]

    h = x_ref[...].astype(jnp.float32)
    for l in range(n_lin):
        w = refs[1 + 2 * l][...]
        b = refs[2 + 2 * l][...]
        h = jnp.dot(h, w.astype(jnp.float32),
                    preferred_element_type=jnp.float32) + b.astype(jnp.float32)
        if l < n_lin - 1:
            h = jnp.maximum(h, 0.0)
    o_ref[...] = h.astype(o_ref.dtype)


def mlp_forward(x, layers, *, out_dim):
    """Forward pass of the PyTorch MLP (inference: Dropout = identity)."""
    x = x.reshape(x.shape[0], -1)
    M, K = x.shape
    n_lin = len(layers)
    assert layers[0][0].shape[0] == K, "flattened input width mismatch"
    n_out_p = layers[-1][0].shape[1]           # lane-padded output width

    # --- M tiling -----------------------------------------------------------
    # Single block at tiny batches; >=2 blocks (multiple of 8, capped at 256)
    # once the batch allows it so the "parallel" M axis can shard across both
    # TensorCores on v7x.
    Mp8 = _round_up(M, 8)
    if Mp8 <= 8:
        tm = Mp8
    else:
        tm = min(256, _round_up(Mp8 // 2, 8))
    Mp = _round_up(Mp8, tm)
    x_p = x if Mp == M else jnp.pad(x, ((0, Mp - M), (0, 0)))

    # --- specs ---------------------------------------------------------------
    in_specs = [pl.BlockSpec((tm, K), lambda i: (i, 0))]          # activations
    args = [x_p]
    for (w, b) in layers:
        kw, nw = w.shape
        in_specs.append(pl.BlockSpec((kw, nw), lambda i: (0, 0)))  # whole weight
        in_specs.append(pl.BlockSpec((1, nw), lambda i: (0, 0)))   # whole bias
        args.append(w)
        args.append(b)

    out = pl.pallas_call(
        functools.partial(_mlp_kernel, n_lin=n_lin),
        out_shape=jax.ShapeDtypeStruct((Mp, n_out_p), x.dtype),
        grid_spec=pltpu.PrefetchScalarGridSpec(
            num_scalar_prefetch=0,
            grid=(Mp // tm,),
            in_specs=in_specs,
            out_specs=pl.BlockSpec((tm, n_out_p), lambda i: (i, 0)),
        ),
        compiler_params=pltpu.CompilerParams(
            dimension_semantics=("parallel",),
            vmem_limit_bytes=32 * 1024 * 1024,
        ),
    )(*args)

    # Single slice at the very end (drop M pad + lane pad of the last layer).
    return out[:M, :out_dim]


def init_mlp_params(key, input_dim=784, hidden_dim=256, output_dim=64,
                    num_layers=3):
    """Matches the PyTorch MLP's Linear stack.  Weights are stored
    pre-transposed [D_in, D_out] and zero-padded ONCE at init time:
      * each layer's D_out is padded up to a multiple of 128 (lane-dense),
      * each layer's D_in is padded to the previous layer's padded width,
    so the jitted forward contains no per-call transpose/pad of parameters.
    Init = nn.Linear default U(-1/sqrt(fan_in), 1/sqrt(fan_in))."""
    dims = [(input_dim, hidden_dim)]
    for _ in range(num_layers - 1):
        dims.append((hidden_dim, hidden_dim))
    dims.append((hidden_dim, output_dim))

    layers = []
    prev_out_p = input_dim                      # first layer's K is not padded
    for (d_in, d_out) in dims:
        key, kw, kb = jax.random.split(key, 3)
        bound = 1.0 / jnp.sqrt(jnp.float32(d_in))
        w_t = jax.random.uniform(kw, (d_in, d_out), jnp.float32,
                                 minval=-bound, maxval=bound)
        b = jax.random.uniform(kb, (d_out,), jnp.float32,
                               minval=-bound, maxval=bound)
        d_out_p = _round_up(d_out, 128)
        w_p = jnp.zeros((prev_out_p, d_out_p), jnp.float32)
        w_p = w_p.at[:d_in, :d_out].set(w_t)
        b_p = jnp.zeros((1, d_out_p), jnp.float32).at[0, :d_out].set(b)
        layers.append((w_p, b_p))
        prev_out_p = d_out_p
    return layers, output_dim


def mlp_forward_ref(x, layers, out_dim):
    """Pure-JAX reference with identical semantics (zero padding is exact)."""
    x = x.reshape(x.shape[0], -1)
    for (w, b) in layers[:-1]:
        x = jnp.maximum(
            jnp.dot(x, w, precision=jax.lax.Precision.HIGHEST) + b, 0.0)
    w, b = layers[-1]
    y = jnp.dot(x, w, precision=jax.lax.Precision.HIGHEST) + b
    return y[:, :out_dim]


if __name__ == "__main__":
    key = jax.random.PRNGKey(0)
    k_x, k_p = jax.random.split(key)

    batch = 8
    input_dim, hidden_dim, output_dim, num_layers = 784, 256, 64, 3

    # Image-like input (B, 28, 28); the forward flattens it, as in the module.
    x = jax.random.normal(k_x, (batch, 28, 28), jnp.float32)
    layers, out_dim = init_mlp_params(k_p, input_dim, hidden_dim, output_dim,
                                      num_layers)

    fwd = jax.jit(functools.partial(mlp_forward, out_dim=out_dim))
    y = jax.block_until_ready(fwd(x, layers))

    y_ref = mlp_forward_ref(x, layers, out_dim)
    assert y.shape == (batch, output_dim)
    max_err = float(jnp.max(jnp.abs(y - y_ref)))
    assert jnp.allclose(y, y_ref, atol=2e-3, rtol=2e-3), max_err

    print("KERNEL_OK")
</pallas_src>

<mosaic_0001>
module attributes {stable_mosaic.version = 11 : i64} {
  func.func @_mlp_kernel(%arg0: i32, %arg1: memref<8x784xf32, #tpu.memory_space<vmem>>, %arg2: memref<784x256xf32, #tpu.memory_space<vmem>>, %arg3: memref<1x256xf32, #tpu.memory_space<vmem>>, %arg4: memref<256x256xf32, #tpu.memory_space<vmem>>, %arg5: memref<1x256xf32, #tpu.memory_space<vmem>>, %arg6: memref<256x256xf32, #tpu.memory_space<vmem>>, %arg7: memref<1x256xf32, #tpu.memory_space<vmem>>, %arg8: memref<256x128xf32, #tpu.memory_space<vmem>>, %arg9: memref<1x128xf32, #tpu.memory_space<vmem>>, %arg10: memref<8x128xf32, #tpu.memory_space<vmem>>) attributes {dimension_semantics = [#tpu.dimension_semantics<parallel>], iteration_bounds = array<i64: 1>, scalar_prefetch = 0 : i64, scratch_operands = 0 : i64, tpu.core_type = #tpu.core_type<tc>, window_params = [{transform_indices = @transform_0, window_bounds = array<i64: 8, 784>}, {pipeline_mode = #tpu.pipeline_mode<synchronous>, transform_indices = @transform_1, window_bounds = array<i64: 784, 256>}, {pipeline_mode = #tpu.pipeline_mode<synchronous>, transform_indices = @transform_2, window_bounds = array<i64: 1, 256>}, {pipeline_mode = #tpu.pipeline_mode<synchronous>, transform_indices = @transform_3, window_bounds = array<i64: 256, 256>}, {pipeline_mode = #tpu.pipeline_mode<synchronous>, transform_indices = @transform_4, window_bounds = array<i64: 1, 256>}, {pipeline_mode = #tpu.pipeline_mode<synchronous>, transform_indices = @transform_5, window_bounds = array<i64: 256, 256>}, {pipeline_mode = #tpu.pipeline_mode<synchronous>, transform_indices = @transform_6, window_bounds = array<i64: 1, 256>}, {pipeline_mode = #tpu.pipeline_mode<synchronous>, transform_indices = @transform_7, window_bounds = array<i64: 256, 128>}, {pipeline_mode = #tpu.pipeline_mode<synchronous>, transform_indices = @transform_8, window_bounds = array<i64: 1, 128>}, {transform_indices = @transform_9, window_bounds = array<i64: 8, 128>}]} {
    %c0 = arith.constant 0 : index
    %c0_0 = arith.constant 0 : index
    %0 = vector.load %arg1[%c0, %c0_0] : memref<8x784xf32, #tpu.memory_space<vmem>>, vector<8x784xf32>
    %c0_1 = arith.constant 0 : index
    %c0_2 = arith.constant 0 : index
    %1 = vector.load %arg2[%c0_1, %c0_2] : memref<784x256xf32, #tpu.memory_space<vmem>>, vector<784x256xf32>
    %c0_3 = arith.constant 0 : index
    %c0_4 = arith.constant 0 : index
    %2 = vector.load %arg3[%c0_3, %c0_4] : memref<1x256xf32, #tpu.memory_space<vmem>>, vector<1x256xf32>
    %cst = arith.constant dense<0.000000e+00> : vector<8x256xf32>
    %3 = tpu.matmul %0, %1, %cst {dimension_numbers = #tpu.dot_dimension_numbers<[1], [0], [0], [1], [0, 0, 1, 1], [], []>} : vector<8x784xf32>, vector<784x256xf32>, vector<8x256xf32> -> vector<8x256xf32>
    %4 = vector.broadcast %2 : vector<1x256xf32> to vector<8x256xf32>
    %5 = arith.addf %3, %4 : vector<8x256xf32>
    %cst_5 = arith.constant 0.000000e+00 : f32
    %6 = vector.broadcast %cst_5 : f32 to vector<8x256xf32>
    %7 = arith.maximumf %5, %6 : vector<8x256xf32>
    %c0_6 = arith.constant 0 : index
    %c0_7 = arith.constant 0 : index
    %8 = vector.load %arg4[%c0_6, %c0_7] : memref<256x256xf32, #tpu.memory_space<vmem>>, vector<256x256xf32>
    %c0_8 = arith.constant 0 : index
    %c0_9 = arith.constant 0 : index
    %9 = vector.load %arg5[%c0_8, %c0_9] : memref<1x256xf32, #tpu.memory_space<vmem>>, vector<1x256xf32>
    %cst_10 = arith.constant dense<0.000000e+00> : vector<8x256xf32>
    %10 = tpu.matmul %7, %8, %cst_10 {dimension_numbers = #tpu.dot_dimension_numbers<[1], [0], [0], [1], [0, 0, 1, 1], [], []>} : vector<8x256xf32>, vector<256x256xf32>, vector<8x256xf32> -> vector<8x256xf32>
    %11 = vector.broadcast %9 : vector<1x256xf32> to vector<8x256xf32>
    %12 = arith.addf %10, %11 : vector<8x256xf32>
    %cst_11 = arith.constant 0.000000e+00 : f32
    %13 = vector.broadcast %cst_11 : f32 to vector<8x256xf32>
    %14 = arith.maximumf %12, %13 : vector<8x256xf32>
    %c0_12 = arith.constant 0 : index
    %c0_13 = arith.constant 0 : index
    %15 = vector.load %arg6[%c0_12, %c0_13] : memref<256x256xf32, #tpu.memory_space<vmem>>, vector<256x256xf32>
    %c0_14 = arith.constant 0 : index
    %c0_15 = arith.constant 0 : index
    %16 = vector.load %arg7[%c0_14, %c0_15] : memref<1x256xf32, #tpu.memory_space<vmem>>, vector<1x256xf32>
    %cst_16 = arith.constant dense<0.000000e+00> : vector<8x256xf32>
    %17 = tpu.matmul %14, %15, %cst_16 {dimension_numbers = #tpu.dot_dimension_numbers<[1], [0], [0], [1], [0, 0, 1, 1], [], []>} : vector<8x256xf32>, vector<256x256xf32>, vector<8x256xf32> -> vector<8x256xf32>
    %18 = vector.broadcast %16 : vector<1x256xf32> to vector<8x256xf32>
    %19 = arith.addf %17, %18 : vector<8x256xf32>
    %cst_17 = arith.constant 0.000000e+00 : f32
    %20 = vector.broadcast %cst_17 : f32 to vector<8x256xf32>
    %21 = arith.maximumf %19, %20 : vector<8x256xf32>
    %c0_18 = arith.constant 0 : index
    %c0_19 = arith.constant 0 : index
    %22 = vector.load %arg8[%c0_18, %c0_19] : memref<256x128xf32, #tpu.memory_space<vmem>>, vector<256x128xf32>
    %c0_20 = arith.constant 0 : index
    %c0_21 = arith.constant 0 : index
    %23 = vector.load %arg9[%c0_20, %c0_21] : memref<1x128xf32, #tpu.memory_space<vmem>>, vector<1x128xf32>
    %cst_22 = arith.constant dense<0.000000e+00> : vector<8x128xf32>
    %24 = tpu.matmul %21, %22, %cst_22 {dimension_numbers = #tpu.dot_dimension_numbers<[1], [0], [0], [1], [0, 0, 1, 1], [], []>} : vector<8x256xf32>, vector<256x128xf32>, vector<8x128xf32> -> vector<8x128xf32>
    %25 = vector.broadcast %23 : vector<1x128xf32> to vector<8x128xf32>
    %26 = arith.addf %24, %25 : vector<8x128xf32>
    %c0_23 = arith.constant 0 : index
    %c0_24 = arith.constant 0 : index
    %27 = vector.load %arg10[%c0_23, %c0_24] : memref<8x128xf32, #tpu.memory_space<vmem>>, vector<8x128xf32>
    tpu.vector_store %arg10[%c0_23, %c0_24], %26 {strides = array<i32>} : memref<8x128xf32, #tpu.memory_space<vmem>>, vector<8x128xf32>,
    return
  }
  func.func @transform_0(%arg0: i32) -> (i32, i32) {
    %c0_i32 = arith.constant 0 : i32
    %c0_i32_0 = arith.constant 0 : i32
    return %arg0, %c0_i32 : i32, i32
  }
  func.func @transform_1(%arg0: i32) -> (i32, i32) {
    %c0_i32 = arith.constant 0 : i32
    %c0_i32_0 = arith.constant 0 : i32
    %c0_i32_1 = arith.constant 0 : i32
    return %c0_i32, %c0_i32_0 : i32, i32
  }
  func.func @transform_2(%arg0: i32) -> (i32, i32) {
    %c0_i32 = arith.constant 0 : i32
    %c0_i32_0 = arith.constant 0 : i32
    %c0_i32_1 = arith.constant 0 : i32
    return %c0_i32, %c0_i32_0 : i32, i32
  }
  func.func @transform_3(%arg0: i32) -> (i32, i32) {
    %c0_i32 = arith.constant 0 : i32
    %c0_i32_0 = arith.constant 0 : i32
    %c0_i32_1 = arith.constant 0 : i32
    return %c0_i32, %c0_i32_0 : i32, i32
  }
  func.func @transform_4(%arg0: i32) -> (i32, i32) {
    %c0_i32 = arith.constant 0 : i32
    %c0_i32_0 = arith.constant 0 : i32
    %c0_i32_1 = arith.constant 0 : i32
    return %c0_i32, %c0_i32_0 : i32, i32
  }
  func.func @transform_5(%arg0: i32) -> (i32, i32) {
    %c0_i32 = arith.constant 0 : i32
    %c0_i32_0 = arith.constant 0 : i32
    %c0_i32_1 = arith.constant 0 : i32
    return %c0_i32, %c0_i32_0 : i32, i32
  }
  func.func @transform_6(%arg0: i32) -> (i32, i32) {
    %c0_i32 = arith.constant 0 : i32
    %c0_i32_0 = arith.constant 0 : i32
    %c0_i32_1 = arith.constant 0 : i32
    return %c0_i32, %c0_i32_0 : i32, i32
  }
  func.func @transform_7(%arg0: i32) -> (i32, i32) {
    %c0_i32 = arith.constant 0 : i32
    %c0_i32_0 = arith.constant 0 : i32
    %c0_i32_1 = arith.constant 0 : i32
    return %c0_i32, %c0_i32_0 : i32, i32
  }
  func.func @transform_8(%arg0: i32) -> (i32, i32) {
    %c0_i32 = arith.constant 0 : i32
    %c0_i32_0 = arith.constant 0 : i32
    %c0_i32_1 = arith.constant 0 : i32
    return %c0_i32, %c0_i32_0 : i32, i32
  }
  func.func @transform_9(%arg0: i32) -> (i32, i32) {
    %c0_i32 = arith.constant 0 : i32
    %c0_i32_0 = arith.constant 0 : i32
    return %arg0, %c0_i32 : i32, i32
  }
}

</mosaic_0001>

<llo_original>
// kernel: mlp_forward.1
$region0: #{mlp_forward.1}
  #allocation0 [shape = 'u32[]', space=smem, size = 0x4, offset = 0x4, fixed_abs, tag = 'smem constant byte address 0x4 - core index']
  #allocation1 [shape = 'u32[144,128]{1,0:T(1,128)}', space=vmem, size = 0x12000, scoped, tag = 'internal scratch']
  %s0 = inlined_call_operand.vmem [shape: f32[8,784], index: 0, kind: input, shape index: {}]
  %s1 = inlined_call_operand.hbm [shape: f32[784,256], index: 1, kind: input, shape index: {}]
  %s2 = inlined_call_operand.vmem [shape: f32[1,256], index: 2, kind: input, shape index: {}]
  %s3 = inlined_call_operand.vmem [shape: f32[256,256], index: 3, kind: input, shape index: {}]
  %s4 = inlined_call_operand.vmem [shape: f32[1,256], index: 4, kind: input, shape index: {}]
  %s5 = inlined_call_operand.hbm [shape: f32[256,256], index: 5, kind: input, shape index: {}]
  %s6 = inlined_call_operand.vmem [shape: f32[1,256], index: 6, kind: input, shape index: {}]
  %s7 = inlined_call_operand.vmem [shape: f32[256,128], index: 7, kind: input, shape index: {}]
  %s8 = inlined_call_operand.vmem [shape: f32[1,128], index: 8, kind: input, shape index: {}]
  %s9 = inlined_call_operand.hbm [shape: f32[8,128], index: 9, kind: output, shape index: {}]
  %s10 = sld [smem:[#allocation0]]
  $region54: #{mlp_forward.1} parent=0
    _
  %s12 = ssub.s32 1, %s10
  %s13 = scalar_select 0, %s12, %s10
  $region1: #{mlp_forward.1} parent=0
    #allocation2 [shape = 'u8[802816]{0}', space=vmem, size = 0xc4000, scoped, tag = 'input window, operand 1, single buffered']
    #allocation3 [shape = 's32[1]{0}', space=sflag, size = 0x4, scoped, tag = 'scoped memory for mlp_forward.1']
    #allocation4 [shape = 's32[1]{0}', space=sflag, size = 0x4, scoped, tag = 'scoped memory for mlp_forward.1']
    #allocation5 [shape = 'u8[262144]{0}', space=vmem, size = 0x40000, scoped, tag = 'input window, operand 5, single buffered']
    #allocation6 [shape = 's32[1]{0}', space=sflag, size = 0x4, scoped, tag = 'scoped memory for mlp_forward.1']
    #allocation7 [shape = 'u8[4096]{0}', space=vmem, size = 0x1000, scoped, tag = 'output window, operand 0, single buffered']
    %14 = vsyncpa [#allocation3], 0
    %15 = vsyncpa [#allocation6], 0
    %16 = vsyncpa [#allocation4], 0
    // Predicated region
    $region2: #{mlp_forward.1} parent=1 // pred_check
      _
    $region3: #{mlp_forward.1} parent=1 // pred_check_branch
      %18 = sbr.rel (0) target = $region5
    $region4: #{mlp_forward.1} parent=1 // pred_region
      _
    $region5: #{mlp_forward.1} parent=1 // pred_fallthru
      _
    // Predicated region
    $region6: #{mlp_forward.1} parent=1 // pred_check
      _
    $region7: #{mlp_forward.1} parent=1 // pred_check_branch
      %20 = sbr.rel (0) target = $region9
    $region8: #{mlp_forward.1} parent=1 // pred_region
      %s22 = ssub.s32 25088, 25088
      %23 = vsyncadd [#allocation3], %s22
      %s24 = sshll.u32 [#allocation2], 4
      %s25 = int_to_ptr.vmem [resolvable:$true] %s24
      %30 = dma.hbm_to_vmem [thread:$0]  %s1, 25088, %s25, [#allocation3], 256, 256, 16
    $region9: #{mlp_forward.1} parent=1 // pred_fallthru
      _
    // Predicated region
    $region10: #{mlp_forward.1} parent=1 // pred_check
      _
    $region11: #{mlp_forward.1} parent=1 // pred_check_branch
      %32 = sbr.rel (0) target = $region13
    $region12: #{mlp_forward.1} parent=1 // pred_region
      _
    $region13: #{mlp_forward.1} parent=1 // pred_fallthru
      _
    // Predicated region
    $region14: #{mlp_forward.1} parent=1 // pred_check
      _
    $region15: #{mlp_forward.1} parent=1 // pred_check_branch
      %34 = sbr.rel (0) target = $region17
    $region16: #{mlp_forward.1} parent=1 // pred_region
      _
    $region17: #{mlp_forward.1} parent=1 // pred_fallthru
      _
    // Predicated region
    $region18: #{mlp_forward.1} parent=1 // pred_check
      _
    $region19: #{mlp_forward.1} parent=1 // pred_check_branch
      %36 = sbr.rel (0) target = $region21
    $region20: #{mlp_forward.1} parent=1 // pred_region
      _
    $region21: #{mlp_forward.1} parent=1 // pred_fallthru
      _
    // Predicated region
    $region22: #{mlp_forward.1} parent=1 // pred_check
      _
    $region23: #{mlp_forward.1} parent=1 // pred_check_branch
      %38 = sbr.rel (0) target = $region25
    $region24: #{mlp_forward.1} parent=1 // pred_region
      %s40 = ssub.s32 8192, 8192
      %41 = vsyncadd [#allocation6], %s40
      %s42 = sshll.u32 [#allocation5], 4
      %s43 = int_to_ptr.vmem [resolvable:$true] %s42
      %48 = dma.hbm_to_vmem [thread:$0]  %s5, 8192, %s43, [#allocation6], 256, 256, 16
    $region25: #{mlp_forward.1} parent=1 // pred_fallthru
      _
    // Predicated region
    $region26: #{mlp_forward.1} parent=1 // pred_check
      _
    $region27: #{mlp_forward.1} parent=1 // pred_check_branch
      %50 = sbr.rel (0) target = $region29
    $region28: #{mlp_forward.1} parent=1 // pred_region
      _
    $region29: #{mlp_forward.1} parent=1 // pred_fallthru
      _
    // Predicated region
    $region30: #{mlp_forward.1} parent=1 // pred_check
      _
    $region31: #{mlp_forward.1} parent=1 // pred_check_branch
      %52 = sbr.rel (0) target = $region33
    $region32: #{mlp_forward.1} parent=1 // pred_region
      _
    $region33: #{mlp_forward.1} parent=1 // pred_fallthru
      _
    // Predicated region
    $region34: #{mlp_forward.1} parent=1 // pred_check
      _
    $region35: #{mlp_forward.1} parent=1 // pred_check_branch
      %54 = sbr.rel (0) target = $region37
    $region36: #{mlp_forward.1} parent=1 // pred_region
      _
    $region37: #{mlp_forward.1} parent=1 // pred_fallthru
      _
    // Predicated region
    $region38: #{mlp_forward.1} parent=1 // pred_check
      _
    $region39: #{mlp_forward.1} parent=1 // pred_check_branch
      %56 = sbr.rel (0) target = $region41
    $region40: #{mlp_forward.1} parent=1 // pred_region
      %57 = dma.done [#allocation3], 25088
    $region41: #{mlp_forward.1} parent=1 // pred_fallthru
      _
    // Predicated region
    $region42: #{mlp_forward.1} parent=1 // pred_check
      _
    $region43: #{mlp_forward.1} parent=1 // pred_check_branch
      %59 = sbr.rel (0) target = $region45
    $region44: #{mlp_forward.1} parent=1 // pred_region
      %60 = dma.done [#allocation6], 8192
    $region45: #{mlp_forward.1} parent=1 // pred_fallthru
      _
    %v61 = vld [vmem:[%s0] sm:$0xff]
    %v62 = vld [vmem:[%s0 + $0x8] sm:$0xff]
    %v63 = vld [vmem:[%s0 + $0x10] sm:$0xff]
    %v64 = vld [vmem:[%s0 + $0x18] sm:$0xff]
    %v65 = vld [vmem:[%s0 + $0x20] sm:$0xff]
    %v66 = vld [vmem:[%s0 + $0x28] sm:$0xff]
    %v67 = vld [vmem:[%s0 + $0x30] sm:$0xff]
    %v68 = vld [vmem:[#allocation2] sm:$0xff]
    %v69 = vld [vmem:[#allocation2 + $0x8] sm:$0xff]
    %v70 = vld [vmem:[#allocation2 + $0x10] sm:$0xff]
    %v71 = vld [vmem:[#allocation2 + $0x18] sm:$0xff]
    %v72 = vld [vmem:[#allocation2 + $0x20] sm:$0xff]
    %v73 = vld [vmem:[#allocation2 + $0x28] sm:$0xff]
    %v74 = vld [vmem:[#allocation2 + $0x30] sm:$0xff]
    %v75 = vld [vmem:[#allocation2 + $0x38] sm:$0xff]
    %v76 = vld [vmem:[#allocation2 + $0x40] sm:$0xff]
    %v77 = vld [vmem:[#allocation2 + $0x48] sm:$0xff]
    %v78 = vld [vmem:[#allocation2 + $0x50] sm:$0xff]
    %v79 = vld [vmem:[#allocation2 + $0x58] sm:$0xff]
    %v80 = vld [vmem:[#allocation2 + $0x60] sm:$0xff]
    %v81 = vld [vmem:[#allocation2 + $0x68] sm:$0xff]
    %v82 = vld [vmem:[#allocation2 + $0x70] sm:$0xff]
    %v83 = vld [vmem:[#allocation2 + $0x78] sm:$0xff]
    %v84 = vld [vmem:[#allocation2 + $0x80] sm:$0xff]
    %v85 = vld [vmem:[#allocation2 + $0x88] sm:$0xff]
    %v86 = vld [vmem:[#allocation2 + $0x90] sm:$0xff]
    %v87 = vld [vmem:[#allocation2 + $0x98] sm:$0xff]
    %v88 = vld [vmem:[#allocation2 + $0xa0] sm:$0xff]
    %v89 = vld [vmem:[#allocation2 + $0xa8] sm:$0xff]
    %v90 = vld [vmem:[#allocation2 + $0xb0] sm:$0xff]
    %v91 = vld [vmem:[#allocation2 + $0xb8] sm:$0xff]
    %v92 = vld [vmem:[#allocation2 + $0xc0] sm:$0xff]
    %v93 = vld [vmem:[#allocation2 + $0xc8] sm:$0xff]
    %v94 = vld [vmem:[#allocation2 + $0xd0] sm:$0xff]
    %v95 = vld [vmem:[#allocation2 + $0xd8] sm:$0xff]
    %v96 = vld [vmem:[#allocation2 + $0xe0] sm:$0xff]
    %v97 = vld [vmem:[#allocation2 + $0xe8] sm:$0xff]
    %v98 = vld [vmem:[#allocation2 + $0xf0] sm:$0xff]
    %v99 = vld [vmem:[#allocation2 + $0xf8] sm:$0xff]
    %v100 = vld [vmem:[#allocation2 + $0x100] sm:$0xff]
    %v101 = vld [vmem:[#allocation2 + $0x108] sm:$0xff]
    %v102 = vld [vmem:[#allocation2 + $0x110] sm:$0xff]
    %v103 = vld [vmem:[#allocation2 + $0x118] sm:$0xff]
    %v104 = vld [vmem:[#allocation2 + $0x120] sm:$0xff]
    %v105 = vld [vmem:[#allocation2 + $0x128] sm:$0xff]
    %v106 = vld [vmem:[#allocation2 + $0x130] sm:$0xff]
    %v107 = vld [vmem:[#allocation2 + $0x138] sm:$0xff]
    %v108 = vld [vmem:[#allocation2 + $0x140] sm:$0xff]
    %v109 = vld [vmem:[#allocation2 + $0x148] sm:$0xff]
    %v110 = vld [vmem:[#allocation2 + $0x150] sm:$0xff]
    %v111 = vld [vmem:[#allocation2 + $0x158] sm:$0xff]
    %v112 = vld [vmem:[#allocation2 + $0x160] sm:$0xff]
    %v113 = vld [vmem:[#allocation2 + $0x168] sm:$0xff]
    %v114 = vld [vmem:[#allocation2 + $0x170] sm:$0xff]
    %v115 = vld [vmem:[#allocation2 + $0x178] sm:$0xff]
    %v116 = vld [vmem:[#allocation2 + $0x180] sm:$0xff]
    %v117 = vld [vmem:[#allocation2 + $0x188] sm:$0xff]
    %v118 = vld [vmem:[#allocation2 + $0x190] sm:$0xff]
    %v119 = vld [vmem:[#allocation2 + $0x198] sm:$0xff]
    %v120 = vld [vmem:[#allocation2 + $0x1a0] sm:$0xff]
    %v121 = vld [vmem:[#allocation2 + $0x1a8] sm:$0xff]
    %v122 = vld [vmem:[#allocation2 + $0x1b0] sm:$0xff]
    %v123 = vld [vmem:[#allocation2 + $0x1b8] sm:$0xff]
    %v124 = vld [vmem:[#allocation2 + $0x1c0] sm:$0xff]
    %v125 = vld [vmem:[#allocation2 + $0x1c8] sm:$0xff]
    %v126 = vld [vmem:[#allocation2 + $0x1d0] sm:$0xff]
    %v127 = vld [vmem:[#allocation2 + $0x1d8] sm:$0xff]
    %v128 = vld [vmem:[#allocation2 + $0x1e0] sm:$0xff]
    %v129 = vld [vmem:[#allocation2 + $0x1e8] sm:$0xff]
    %v130 = vld [vmem:[#allocation2 + $0x1f0] sm:$0xff]
    %v131 = vld [vmem:[#allocation2 + $0x1f8] sm:$0xff]
    %v132 = vld [vmem:[#allocation2 + $0x200] sm:$0xff]
    %v133 = vld [vmem:[#allocation2 + $0x208] sm:$0xff]
    %v134 = vld [vmem:[#allocation2 + $0x210] sm:$0xff]
    %v135 = vld [vmem:[#allocation2 + $0x218] sm:$0xff]
    %v136 = vld [vmem:[#allocation2 + $0x220] sm:$0xff]
    %v137 = vld [vmem:[#allocation2 + $0x228] sm:$0xff]
    %v138 = vld [vmem:[#allocation2 + $0x230] sm:$0xff]
    %v139 = vld [vmem:[#allocation2 + $0x238] sm:$0xff]
    %v140 = vld [vmem:[#allocation2 + $0x240] sm:$0xff]
    %v141 = vld [vmem:[#allocation2 + $0x248] sm:$0xff]
    %v142 = vld [vmem:[#allocation2 + $0x250] sm:$0xff]
    %v143 = vld [vmem:[#allocation2 + $0x258] sm:$0xff]
    %v144 = vld [vmem:[#allocation2 + $0x260] sm:$0xff]
    %v145 = vld [vmem:[#allocation2 + $0x268] sm:$0xff]
    %v146 = vld [vmem:[#allocation2 + $0x270] sm:$0xff]
    %v147 = vld [vmem:[#allocation2 + $0x278] sm:$0xff]
    %v148 = vld [vmem:[#allocation2 + $0x280] sm:$0xff]
    %v149 = vld [vmem:[#allocation2 + $0x288] sm:$0xff]
    %v150 = vld [vmem:[#allocation2 + $0x290] sm:$0xff]
    %v151 = vld [vmem:[#allocation2 + $0x298] sm:$0xff]
    %v152 = vld [vmem:[#allocation2 + $0x2a0] sm:$0xff]
    %v153 = vld [vmem:[#allocation2 + $0x2a8] sm:$0xff]
    %v154 = vld [vmem:[#allocation2 + $0x2b0] sm:$0xff]
    %v155 = vld [vmem:[#allocation2 + $0x2b8] sm:$0xff]
    %v156 = vld [vmem:[#allocation2 + $0x2c0] sm:$0xff]
    %v157 = vld [vmem:[#allocation2 + $0x2c8] sm:$0xff]
    %v158 = vld [vmem:[#allocation2 + $0x2d0] sm:$0xff]
    %v159 = vld [vmem:[#allocation2 + $0x2d8] sm:$0xff]
    %v160 = vld [vmem:[#allocation2 + $0x2e0] sm:$0xff]
    %v161 = vld [vmem:[#allocation2 + $0x2e8] sm:$0xff]
    %v162 = vld [vmem:[#allocation2 + $0x2f0] sm:$0xff]
    %v163 = vld [vmem:[#allocation2 + $0x2f8] sm:$0xff]
    %v164 = vld [vmem:[#allocation2 + $0x300] sm:$0xff]
    %v165 = vld [vmem:[#allocation2 + $0x308] sm:$0xff]
    %v166 = vld [vmem:[#allocation2 + $0x310] sm:$0xff]
    %v167 = vld [vmem:[#allocation2 + $0x318] sm:$0xff]
    %v168 = vld [vmem:[#allocation2 + $0x320] sm:$0xff]
    %v169 = vld [vmem:[#allocation2 + $0x328] sm:$0xff]
    %v170 = vld [vmem:[#allocation2 + $0x330] sm:$0xff]
    %v171 = vld [vmem:[#allocation2 + $0x338] sm:$0xff]
    %v172 = vld [vmem:[#allocation2 + $0x340] sm:$0xff]
    %v173 = vld [vmem:[#allocation2 + $0x348] sm:$0xff]
    %v174 = vld [vmem:[#allocation2 + $0x350] sm:$0xff]
    %v175 = vld [vmem:[#allocation2 + $0x358] sm:$0xff]
    %v176 = vld [vmem:[#allocation2 + $0x360] sm:$0xff]
    %v177 = vld [vmem:[#allocation2 + $0x368] sm:$0xff]
    %v178 = vld [vmem:[#allocation2 + $0x370] sm:$0xff]
    %v179 = vld [vmem:[#allocation2 + $0x378] sm:$0xff]
    %v180 = vld [vmem:[#allocation2 + $0x380] sm:$0xff]
    %v181 = vld [vmem:[#allocation2 + $0x388] sm:$0xff]
    %v182 = vld [vmem:[#allocation2 + $0x390] sm:$0xff]
    %v183 = vld [vmem:[#allocation2 + $0x398] sm:$0xff]
    %v184 = vld [vmem:[#allocation2 + $0x3a0] sm:$0xff]
    %v185 = vld [vmem:[#allocation2 + $0x3a8] sm:$0xff]
    %v186 = vld [vmem:[#allocation2 + $0x3b0] sm:$0xff]
    %v187 = vld [vmem:[#allocation2 + $0x3b8] sm:$0xff]
    %v188 = vld [vmem:[#allocation2 + $0x3c0] sm:$0xff]
    %v189 = vld [vmem:[#allocation2 + $0x3c8] sm:$0xff]
    %v190 = vld [vmem:[#allocation2 + $0x3d0] sm:$0xff]
    %v191 = vld [vmem:[#allocation2 + $0x3d8] sm:$0xff]
    %v192 = vld [vmem:[#allocation2 + $0x3e0] sm:$0xff]
    %v193 = vld [vmem:[#allocation2 + $0x3e8] sm:$0xff]
    %v194 = vld [vmem:[#allocation2 + $0x3f0] sm:$0xff]
    %v195 = vld [vmem:[#allocation2 + $0x3f8] sm:$0xff]
    %v196 = vld [vmem:[#allocation2 + $0x400] sm:$0xff]
    %v197 = vld [vmem:[#allocation2 + $0x408] sm:$0xff]
    %v198 = vld [vmem:[#allocation2 + $0x410] sm:$0xff]
    %v199 = vld [vmem:[#allocation2 + $0x418] sm:$0xff]
    %v200 = vld [vmem:[#allocation2 + $0x420] sm:$0xff]
    %v201 = vld [vmem:[#allocation2 + $0x428] sm:$0xff]
    %v202 = vld [vmem:[#allocation2 + $0x430] sm:$0xff]
    %v203 = vld [vmem:[#allocation2 + $0x438] sm:$0xff]
    %v204 = vld [vmem:[#allocation2 + $0x440] sm:$0xff]
    %v205 = vld [vmem:[#allocation2 + $0x448] sm:$0xff]
    %v206 = vld [vmem:[#allocation2 + $0x450] sm:$0xff]
    %v207 = vld [vmem:[#allocation2 + $0x458] sm:$0xff]
    %v208 = vld [vmem:[#allocation2 + $0x460] sm:$0xff]
    %v209 = vld [vmem:[#allocation2 + $0x468] sm:$0xff]
    %v210 = vld [vmem:[#allocation2 + $0x470] sm:$0xff]
    %v211 = vld [vmem:[#allocation2 + $0x478] sm:$0xff]
    %v212 = vld [vmem:[#allocation2 + $0x480] sm:$0xff]
    %v213 = vld [vmem:[#allocation2 + $0x488] sm:$0xff]
    %v214 = vld [vmem:[#allocation2 + $0x490] sm:$0xff]
    %v215 = vld [vmem:[#allocation2 + $0x498] sm:$0xff]
    %v216 = vld [vmem:[#allocation2 + $0x4a0] sm:$0xff]
    %v217 = vld [vmem:[#allocation2 + $0x4a8] sm:$0xff]
    %v218 = vld [vmem:[#allocation2 + $0x4b0] sm:$0xff]
    %v219 = vld [vmem:[#allocation2 + $0x4b8] sm:$0xff]
    %v220 = vld [vmem:[#allocation2 + $0x4c0] sm:$0xff]
    %v221 = vld [vmem:[#allocation2 + $0x4c8] sm:$0xff]
    %v222 = vld [vmem:[#allocation2 + $0x4d0] sm:$0xff]
    %v223 = vld [vmem:[#allocation2 + $0x4d8] sm:$0xff]
    %v224 = vld [vmem:[#allocation2 + $0x4e0] sm:$0xff]
    %v225 = vld [vmem:[#allocation2 + $0x4e8] sm:$0xff]
    %v226 = vld [vmem:[#allocation2 + $0x4f0] sm:$0xff]
    %v227 = vld [vmem:[#allocation2 + $0x4f8] sm:$0xff]
    %v228 = vld [vmem:[#allocation2 + $0x500] sm:$0xff]
    %v229 = vld [vmem:[#allocation2 + $0x508] sm:$0xff]
    %v230 = vld [vmem:[#allocation2 + $0x510] sm:$0xff]
    %v231 = vld [vmem:[#allocation2 + $0x518] sm:$0xff]
    %v232 = vld [vmem:[#allocation2 + $0x520] sm:$0xff]
    %v233 = vld [vmem:[#allocation2 + $0x528] sm:$0xff]
    %v234 = vld [vmem:[#allocation2 + $0x530] sm:$0xff]
    %v235 = vld [vmem:[#allocation2 + $0x538] sm:$0xff]
    %v236 = vld [vmem:[#allocation2 + $0x540] sm:$0xff]
    %v237 = vld [vmem:[#allocation2 + $0x548] sm:$0xff]
    %v238 = vld [vmem:[#allocation2 + $0x550] sm:$0xff]
    %v239 = vld [vmem:[#allocation2 + $0x558] sm:$0xff]
    %v240 = vld [vmem:[#allocation2 + $0x560] sm:$0xff]
    %v241 = vld [vmem:[#allocation2 + $0x568] sm:$0xff]
    %v242 = vld [vmem:[#allocation2 + $0x570] sm:$0xff]
    %v243 = vld [vmem:[#allocation2 + $0x578] sm:$0xff]
    %v244 = vld [vmem:[#allocation2 + $0x580] sm:$0xff]
    %v245 = vld [vmem:[#allocation2 + $0x588] sm:$0xff]
    %v246 = vld [vmem:[#allocation2 + $0x590] sm:$0xff]
    %v247 = vld [vmem:[#allocation2 + $0x598] sm:$0xff]
    %v248 = vld [vmem:[#allocation2 + $0x5a0] sm:$0xff]
    %v249 = vld [vmem:[#allocation2 + $0x5a8] sm:$0xff]
    %v250 = vld [vmem:[#allocation2 + $0x5b0] sm:$0xff]
    %v251 = vld [vmem:[#allocation2 + $0x5b8] sm:$0xff]
    %v252 = vld [vmem:[#allocation2 + $0x5c0] sm:$0xff]
    %v253 = vld [vmem:[#allocation2 + $0x5c8] sm:$0xff]
    %v254 = vld [vmem:[#allocation2 + $0x5d0] sm:$0xff]
    %v255 = vld [vmem:[#allocation2 + $0x5d8] sm:$0xff]
    %v256 = vld [vmem:[#allocation2 + $0x5e0] sm:$0xff]
    %v257 = vld [vmem:[#allocation2 + $0x5e8] sm:$0xff]
    %v258 = vld [vmem:[#allocation2 + $0x5f0] sm:$0xff]
    %v259 = vld [vmem:[#allocation2 + $0x5f8] sm:$0xff]
    %v260 = vld [vmem:[#allocation2 + $0x600] sm:$0xff]
    %v261 = vld [vmem:[#allocation2 + $0x608] sm:$0xff]
    %v262 = vld [vmem:[#allocation2 + $0x610] sm:$0xff]
    %v263 = vld [vmem:[#allocation2 + $0x618] sm:$0xff]
    %v264 = vld [vmem:[%s2] sm:$0x3]
    %v266 = vlaneseq
    %v267 = vshrl.u32 %v266, 7
    %v268 = vsub.s32 0, %v267
    %v269 = vrot.slane %v264, %v268
    %v270 = vlaneseq
    %v271 = vshrl.u32 %v270, 7
    %v272 = vsub.s32 1, %v271
    %v273 = vrot.slane %v264, %v272
    %vm276 = vcmask 130048
    %v278 = vsel %vm276, %v67, 0
    %280 = vmatprep.subr.mxu0 %v99
    %281 = vmatpush1.msra.mxu0 %v98
    %282 = vmatprep.subr.mxu0 %v97
    %283 = vmatpush1.msra.mxu0 %v96
    %284 = vmatprep.subr.mxu0 %v95
    %285 = vmatpush1.msra.mxu0 %v94
    %286 = vmatprep.subr.mxu0 %v93
    %287 = vmatpush1.msra.mxu0 %v92
    %288 = vmatprep.subr.mxu0 %v91
    %289 = vmatpush1.msra.mxu0 %v90
    %290 = vmatprep.subr.mxu0 %v89
    %291 = vmatpush1.msra.mxu0 %v88
    %292 = vmatprep.subr.mxu0 %v87
    %293 = vmatpush1.msra.mxu0 %v86
    %294 = vmatprep.subr.mxu0 %v85
    %295 = vmatpush1.msra.mxu0 %v84
    %296 = vmatprep.subr.mxu0 %v83
    %297 = vmatpush1.msra.mxu0 %v82
    %298 = vmatprep.subr.mxu0 %v81
    %299 = vmatpush1.msra.mxu0 %v80
    %300 = vmatprep.subr.mxu0 %v79
    %301 = vmatpush1.msra.mxu0 %v78
    %302 = vmatprep.subr.mxu0 %v77
    %303 = vmatpush1.msra.mxu0 %v76
    %304 = vmatprep.subr.mxu0 %v75
    %305 = vmatpush1.msra.mxu0 %v74
    %306 = vmatprep.subr.mxu0 %v73
    %307 = vmatpush1.msra.mxu0 %v72
    %308 = vmatprep.subr.mxu0 %v71
    %309 = vmatpush1.msra.mxu0 %v70
    %310 = vmatprep.subr.mxu0 %v69
    %311 = vmatpush1.msra.mxu0 %v68
    %312 = vmatprep.subr.mxu0 %v131
    %313 = vmatpush2.msra.mxu0 %v130
    %314 = vmatprep.subr.mxu0 %v129
    %315 = vmatpush2.msra.mxu0 %v128
    %316 = vmatprep.subr.mxu0 %v127
    %317 = vmatpush2.msra.mxu0 %v126
    %318 = vmatprep.subr.mxu0 %v125
    %319 = vmatpush2.msra.mxu0 %v124
    %320 = vmatprep.subr.mxu0 %v123
    %321 = vmatpush2.msra.mxu0 %v122
    %322 = vmatprep.subr.mxu0 %v121
    %323 = vmatpush2.msra.mxu0 %v120
    %324 = vmatprep.subr.mxu0 %v119
    %325 = vmatpush2.msra.mxu0 %v118
    %326 = vmatprep.subr.mxu0 %v117
    %327 = vmatpush2.msra.mxu0 %v116
    %328 = vmatprep.subr.mxu0 %v115
    %329 = vmatpush2.msra.mxu0 %v114
    %330 = vmatprep.subr.mxu0 %v113
    %331 = vmatpush2.msra.mxu0 %v112
    %332 = vmatprep.subr.mxu0 %v111
    %333 = vmatpush2.msra.mxu0 %v110
    %334 = vmatprep.subr.mxu0 %v109
    %335 = vmatpush2.msra.mxu0 %v108
    %336 = vmatprep.subr.mxu0 %v107
    %337 = vmatpush2.msra.mxu0 %v106
    %338 = vmatprep.subr.mxu0 %v105
    %339 = vmatpush2.msra.mxu0 %v104
    %340 = vmatprep.subr.mxu0 %v103
    %341 = vmatpush2.msra.mxu0 %v102
    %342 = vmatprep.subr.mxu0 %v101
    %343 = vmatpush2.msra.mxu0 %v100
    %344 = vmatprep.mubr.f32.mxu0 %v62
    %345 = vmatmul.mubr.f32.gmra.mxu0 %v61
    %v346 = vpop.f32.mrf.mxu0
    %v347 = vadd.f32 %v269, %v346
    %v348 = vpop.f32.mrf.mxu0
    %v349 = vadd.f32 %v273, %v348
    %350 = vdwg.mxu0
    %351 = vmatprep.subr.mxu0 %v163
    %352 = vmatpush1.msra.mxu0 %v162
    %353 = vmatprep.subr.mxu0 %v161
    %354 = vmatpush1.msra.mxu0 %v160
    %355 = vmatprep.subr.mxu0 %v159
    %356 = vmatpush1.msra.mxu0 %v158
    %357 = vmatprep.subr.mxu0 %v157
    %358 = vmatpush1.msra.mxu0 %v156
    %359 = vmatprep.subr.mxu0 %v155
    %360 = vmatpush1.msra.mxu0 %v154
    %361 = vmatprep.subr.mxu0 %v153
    %362 = vmatpush1.msra.mxu0 %v152
    %363 = vmatprep.subr.mxu0 %v151
    %364 = vmatpush1.msra.mxu0 %v150
    %365 = vmatprep.subr.mxu0 %v149
    %366 = vmatpush1.msra.mxu0 %v148
    %367 = vmatprep.subr.mxu0 %v147
    %368 = vmatpush1.msra.mxu0 %v146
    %369 = vmatprep.subr.mxu0 %v145
    %370 = vmatpush1.msra.mxu0 %v144
    %371 = vmatprep.subr.mxu0 %v143
    %372 = vmatpush1.msra.mxu0 %v142
    %373 = vmatprep.subr.mxu0 %v141
    %374 = vmatpush1.msra.mxu0 %v140
    %375 = vmatprep.subr.mxu0 %v139
    %376 = vmatpush1.msra.mxu0 %v138
    %377 = vmatprep.subr.mxu0 %v137
    %378 = vmatpush1.msra.mxu0 %v136
    %379 = vmatprep.subr.mxu0 %v135
    %380 = vmatpush1.msra.mxu0 %v134
    %381 = vmatprep.subr.mxu0 %v133
    %382 = vmatpush1.msra.mxu0 %v132
    %383 = vmatprep.subr.mxu0 %v195
    %384 = vmatpush2.msra.mxu0 %v194
    %385 = vmatprep.subr.mxu0 %v193
    %386 = vmatpush2.msra.mxu0 %v192
    %387 = vmatprep.subr.mxu0 %v191
    %388 = vmatpush2.msra.mxu0 %v190
    %389 = vmatprep.subr.mxu0 %v189
    %390 = vmatpush2.msra.mxu0 %v188
    %391 = vmatprep.subr.mxu0 %v187
    %392 = vmatpush2.msra.mxu0 %v186
    %393 = vmatprep.subr.mxu0 %v185
    %394 = vmatpush2.msra.mxu0 %v184
    %395 = vmatprep.subr.mxu0 %v183
    %396 = vmatpush2.msra.mxu0 %v182
    %397 = vmatprep.subr.mxu0 %v181
    %398 = vmatpush2.msra.mxu0 %v180
    %399 = vmatprep.subr.mxu0 %v179
    %400 = vmatpush2.msra.mxu0 %v178
    %401 = vmatprep.subr.mxu0 %v177
    %402 = vmatpush2.msra.mxu0 %v176
    %403 = vmatprep.subr.mxu0 %v175
    %404 = vmatpush2.msra.mxu0 %v174
    %405 = vmatprep.subr.mxu0 %v173
    %406 = vmatpush2.msra.mxu0 %v172
    %407 = vmatprep.subr.mxu0 %v171
    %408 = vmatpush2.msra.mxu0 %v170
    %409 = vmatprep.subr.mxu0 %v169
    %410 = vmatpush2.msra.mxu0 %v168
    %411 = vmatprep.subr.mxu0 %v167
    %412 = vmatpush2.msra.mxu0 %v166
    %413 = vmatprep.subr.mxu0 %v165
    %414 = vmatpush2.msra.mxu0 %v164
    %415 = vmatprep.mubr.f32.mxu0 %v64
    %416 = vmatmul.mubr.f32.gmra.mxu0 %v63
    %v417 = vpop.f32.mrf.mxu0
    %v418 = vadd.f32 %v347, %v417
    %v419 = vpop.f32.mrf.mxu0
    %v420 = vadd.f32 %v349, %v419
    %421 = vdwg.mxu0
    %422 = vmatprep.subr.mxu0 %v227
    %423 = vmatpush1.msra.mxu0 %v226
    %424 = vmatprep.subr.mxu0 %v225
    %425 = vmatpush1.msra.mxu0 %v224
    %426 = vmatprep.subr.mxu0 %v223
    %427 = vmatpush1.msra.mxu0 %v222
    %428 = vmatprep.subr.mxu0 %v221
    %429 = vmatpush1.msra.mxu0 %v220
    %430 = vmatprep.subr.mxu0 %v219
    %431 = vmatpush1.msra.mxu0 %v218
    %432 = vmatprep.subr.mxu0 %v217
    %433 = vmatpush1.msra.mxu0 %v216
    %434 = vmatprep.subr.mxu0 %v215
    %435 = vmatpush1.msra.mxu0 %v214
    %436 = vmatprep.subr.mxu0 %v213
    %437 = vmatpush1.msra.mxu0 %v212
    %438 = vmatprep.subr.mxu0 %v211
    %439 = vmatpush1.msra.mxu0 %v210
    %440 = vmatprep.subr.mxu0 %v209
    %441 = vmatpush1.msra.mxu0 %v208
    %442 = vmatprep.subr.mxu0 %v207
    %443 = vmatpush1.msra.mxu0 %v206
    %444 = vmatprep.subr.mxu0 %v205
    %445 = vmatpush1.msra.mxu0 %v204
    %446 = vmatprep.subr.mxu0 %v203
    %447 = vmatpush1.msra.mxu0 %v202
    %448 = vmatprep.subr.mxu0 %v201
    %449 = vmatpush1.msra.mxu0 %v200
    %450 = vmatprep.subr.mxu0 %v199
    %451 = vmatpush1.msra.mxu0 %v198
    %452 = vmatprep.subr.mxu0 %v197
    %453 = vmatpush1.msra.mxu0 %v196
    %454 = vmatprep.subr.mxu0 %v259
    %455 = vmatpush2.msra.mxu0 %v258
    %456 = vmatprep.subr.mxu0 %v257
    %457 = vmatpush2.msra.mxu0 %v256
    %458 = vmatprep.subr.mxu0 %v255
    %459 = vmatpush2.msra.mxu0 %v254
    %460 = vmatprep.subr.mxu0 %v253
    %461 = vmatpush2.msra.mxu0 %v252
    %462 = vmatprep.subr.mxu0 %v251
    %463 = vmatpush2.msra.mxu0 %v250
    %464 = vmatprep.subr.mxu0 %v249
    %465 = vmatpush2.msra.mxu0 %v248
    %466 = vmatprep.subr.mxu0 %v247
    %467 = vmatpush2.msra.mxu0 %v246
    %468 = vmatprep.subr.mxu0 %v245
    %469 = vmatpush2.msra.mxu0 %v244
    %470 = vmatprep.subr.mxu0 %v243
    %471 = vmatpush2.msra.mxu0 %v242
    %472 = vmatprep.subr.mxu0 %v241
    %473 = vmatpush2.msra.mxu0 %v240
    %474 = vmatprep.subr.mxu0 %v239
    %475 = vmatpush2.msra.mxu0 %v238
    %476 = vmatprep.subr.mxu0 %v237
    %477 = vmatpush2.msra.mxu0 %v236
    %478 = vmatprep.subr.mxu0 %v235
    %479 = vmatpush2.msra.mxu0 %v234
    %480 = vmatprep.subr.mxu0 %v233
    %481 = vmatpush2.msra.mxu0 %v232
    %482 = vmatprep.subr.mxu0 %v231
    %483 = vmatpush2.msra.mxu0 %v230
    %484 = vmatprep.subr.mxu0 %v229
    %485 = vmatpush2.msra.mxu0 %v228
    %486 = vmatprep.mubr.f32.mxu0 %v66
    %487 = vmatmul.mubr.f32.gmra.mxu0 %v65
    %v488 = vpop.f32.mrf.mxu0
    %v489 = vadd.f32 %v418, %v488
    %v490 = vpop.f32.mrf.mxu0
    %v491 = vadd.f32 %v420, %v490
    %492 = vdwg.mxu0
    %493 = vmatprep.subr.mxu0 0.0
    %494 = vmatpush1.msra.mxu0 0.0
    %495 = vmatprep.subr.mxu0 0.0
    %496 = vmatpush1.msra.mxu0 0.0
    %497 = vmatprep.subr.mxu0 0.0
    %498 = vmatpush1.msra.mxu0 0.0
    %499 = vmatprep.subr.mxu0 0.0
    %500 = vmatpush1.msra.mxu0 0.0
    %501 = vmatprep.subr.mxu0 0.0
    %502 = vmatpush1.msra.mxu0 0.0
    %503 = vmatprep.subr.mxu0 0.0
    %504 = vmatpush1.msra.mxu0 0.0
    %505 = vmatprep.subr.mxu0 0.0
    %506 = vmatpush1.msra.mxu0 0.0
    %507 = vmatprep.subr.mxu0 0.0
    %508 = vmatpush1.msra.mxu0 0.0
    %509 = vmatprep.subr.mxu0 0.0
    %510 = vmatpush1.msra.mxu0 0.0
    %511 = vmatprep.subr.mxu0 0.0
    %512 = vmatpush1.msra.mxu0 0.0
    %513 = vmatprep.subr.mxu0 0.0
    %514 = vmatpush1.msra.mxu0 0.0
    %515 = vmatprep.subr.mxu0 0.0
    %516 = vmatpush1.msra.mxu0 0.0
    %517 = vmatprep.subr.mxu0 0.0
    %518 = vmatpush1.msra.mxu0 0.0
    %519 = vmatprep.subr.mxu0 0.0
    %520 = vmatpush1.msra.mxu0 0.0
    %521 = vmatprep.subr.mxu0 %v263
    %522 = vmatpush1.msra.mxu0 %v262
    %523 = vmatprep.subr.mxu0 %v261
    %524 = vmatpush1.msra.mxu0 %v260
    %525 = vmatprep.subr.mxu0 0.0
    %526 = vmatpush2.msra.mxu0 0.0
    %527 = vmatprep.subr.mxu0 0.0
    %528 = vmatpush2.msra.mxu0 0.0
    %529 = vmatprep.subr.mxu0 0.0
    %530 = vmatpush2.msra.mxu0 0.0
    %531 = vmatprep.subr.mxu0 0.0
    %532 = vmatpush2.msra.mxu0 0.0
    %533 = vmatprep.subr.mxu0 0.0
    %534 = vmatpush2.msra.mxu0 0.0
    %535 = vmatprep.subr.mxu0 0.0
    %536 = vmatpush2.msra.mxu0 0.0
    %537 = vmatprep.subr.mxu0 0.0
    %538 = vmatpush2.msra.mxu0 0.0
    %539 = vmatprep.subr.mxu0 0.0
    %540 = vmatpush2.msra.mxu0 0.0
    %541 = vmatprep.subr.mxu0 0.0
    %542 = vmatpush2.msra.mxu0 0.0
    %543 = vmatprep.subr.mxu0 0.0
    %544 = vmatpush2.msra.mxu0 0.0
    %545 = vmatprep.subr.mxu0 0.0
    %546 = vmatpush2.msra.mxu0 0.0
    %547 = vmatprep.subr.mxu0 0.0
    %548 = vmatpush2.msra.mxu0 0.0
    %549 = vmatprep.subr.mxu0 0.0
    %550 = vmatpush2.msra.mxu0 0.0
    %551 = vmatprep.subr.mxu0 0.0
    %552 = vmatpush2.msra.mxu0 0.0
    %553 = vmatprep.subr.mxu0 0.0
    %554 = vmatpush2.msra.mxu0 0.0
    %555 = vmatprep.subr.mxu0 0.0
    %556 = vmatpush2.msra.mxu0 0.0
    %557 = vmatprep.mubr.f32.mxu0 0.0
    %558 = vmatmul.mubr.f32.gmra.mxu0 %v278
    %v559 = vpop.f32.mrf.mxu0
    %v560 = vadd.f32 %v489, %v559
    %v561 = vpop.f32.mrf.mxu0
    %v562 = vadd.f32 %v491, %v561
    %563 = vdwg.mxu0
    %v564 = vmax.f32 %v560, 0.0
    %v565 = vmax.f32 %v562, 0.0
    %v566 = vld [vmem:[%s3] sm:$0xff]
    %v567 = vld [vmem:[%s3 + $0x8] sm:$0xff]
    %v568 = vld [vmem:[%s3 + $0x10] sm:$0xff]
    %v569 = vld [vmem:[%s3 + $0x18] sm:$0xff]
    %v570 = vld [vmem:[%s3 + $0x20] sm:$0xff]
    %v571 = vld [vmem:[%s3 + $0x28] sm:$0xff]
    %v572 = vld [vmem:[%s3 + $0x30] sm:$0xff]
    %v573 = vld [vmem:[%s3 + $0x38] sm:$0xff]
    %v574 = vld [vmem:[%s3 + $0x40] sm:$0xff]
    %v575 = vld [vmem:[%s3 + $0x48] sm:$0xff]
    %v576 = vld [vmem:[%s3 + $0x50] sm:$0xff]
    %v577 = vld [vmem:[%s3 + $0x58] sm:$0xff]
    %v578 = vld [vmem:[%s3 + $0x60] sm:$0xff]
    %v579 = vld [vmem:[%s3 + $0x68] sm:$0xff]
    %v580 = vld [vmem:[%s3 + $0x70] sm:$0xff]
    %v581 = vld [vmem:[%s3 + $0x78] sm:$0xff]
    %v582 = vld [vmem:[%s3 + $0x80] sm:$0xff]
    %v583 = vld [vmem:[%s3 + $0x88] sm:$0xff]
    %v584 = vld [vmem:[%s3 + $0x90] sm:$0xff]
    %v585 = vld [vmem:[%s3 + $0x98] sm:$0xff]
    %v586 = vld [vmem:[%s3 + $0xa0] sm:$0xff]
    %v587 = vld [vmem:[%s3 + $0xa8] sm:$0xff]
    %v588 = vld [vmem:[%s3 + $0xb0] sm:$0xff]
    %v589 = vld [vmem:[%s3 + $0xb8] sm:$0xff]
    %v590 = vld [vmem:[%s3 + $0xc0] sm:$0xff]
    %v591 = vld [vmem:[%s3 + $0xc8] sm:$0xff]
    %v592 = vld [vmem:[%s3 + $0xd0] sm:$0xff]
    %v593 = vld [vmem:[%s3 + $0xd8] sm:$0xff]
    %v594 = vld [vmem:[%s3 + $0xe0] sm:$0xff]
    %v595 = vld [vmem:[%s3 + $0xe8] sm:$0xff]
    %v596 = vld [vmem:[%s3 + $0xf0] sm:$0xff]
    %v597 = vld [vmem:[%s3 + $0xf8] sm:$0xff]
    %v598 = vld [vmem:[%s3 + $0x100] sm:$0xff]
    %v599 = vld [vmem:[%s3 + $0x108] sm:$0xff]
    %v600 = vld [vmem:[%s3 + $0x110] sm:$0xff]
    %v601 = vld [vmem:[%s3 + $0x118] sm:$0xff]
    %v602 = vld [vmem:[%s3 + $0x120] sm:$0xff]
    %v603 = vld [vmem:[%s3 + $0x128] sm:$0xff]
    %v604 = vld [vmem:[%s3 + $0x130] sm:$0xff]
    %v605 = vld [vmem:[%s3 + $0x138] sm:$0xff]
    %v606 = vld [vmem:[%s3 + $0x140] sm:$0xff]
    %v607 = vld [vmem:[%s3 + $0x148] sm:$0xff]
    %v608 = vld [vmem:[%s3 + $0x150] sm:$0xff]
    %v609 = vld [vmem:[%s3 + $0x158] sm:$0xff]
    %v610 = vld [vmem:[%s3 + $0x160] sm:$0xff]
    %v611 = vld [vmem:[%s3 + $0x168] sm:$0xff]
    %v612 = vld [vmem:[%s3 + $0x170] sm:$0xff]
    %v613 = vld [vmem:[%s3 + $0x178] sm:$0xff]
    %v614 = vld [vmem:[%s3 + $0x180] sm:$0xff]
    %v615 = vld [vmem:[%s3 + $0x188] sm:$0xff]
    %v616 = vld [vmem:[%s3 + $0x190] sm:$0xff]
    %v617 = vld [vmem:[%s3 + $0x198] sm:$0xff]
    %v618 = vld [vmem:[%s3 + $0x1a0] sm:$0xff]
    %v619 = vld [vmem:[%s3 + $0x1a8] sm:$0xff]
    %v620 = vld [vmem:[%s3 + $0x1b0] sm:$0xff]
    %v621 = vld [vmem:[%s3 + $0x1b8] sm:$0xff]
    %v622 = vld [vmem:[%s3 + $0x1c0] sm:$0xff]
    %v623 = vld [vmem:[%s3 + $0x1c8] sm:$0xff]
    %v624 = vld [vmem:[%s3 + $0x1d0] sm:$0xff]
    %v625 = vld [vmem:[%s3 + $0x1d8] sm:$0xff]
    %v626 = vld [vmem:[%s3 + $0x1e0] sm:$0xff]
    %v627 = vld [vmem:[%s3 + $0x1e8] sm:$0xff]
    %v628 = vld [vmem:[%s3 + $0x1f0] sm:$0xff]
    %v629 = vld [vmem:[%s3 + $0x1f8] sm:$0xff]
    %v630 = vld [vmem:[%s4] sm:$0x3]
    %v632 = vlaneseq
    %v633 = vshrl.u32 %v632, 7
    %v634 = vsub.s32 0, %v633
    %v635 = vrot.slane %v630, %v634
    %v636 = vlaneseq
    %v637 = vshrl.u32 %v636, 7
    %v638 = vsub.s32 1, %v637
    %v639 = vrot.slane %v630, %v638
    %642 = vmatprep.subr.mxu0 %v597
    %643 = vmatpush1.msra.mxu0 %v596
    %644 = vmatprep.subr.mxu0 %v595
    %645 = vmatpush1.msra.mxu0 %v594
    %646 = vmatprep.subr.mxu0 %v593
    %647 = vmatpush1.msra.mxu0 %v592
    %648 = vmatprep.subr.mxu0 %v591
    %649 = vmatpush1.msra.mxu0 %v590
    %650 = vmatprep.subr.mxu0 %v589
    %651 = vmatpush1.msra.mxu0 %v588
    %652 = vmatprep.subr.mxu0 %v587
    %653 = vmatpush1.msra.mxu0 %v586
    %654 = vmatprep.subr.mxu0 %v585
    %655 = vmatpush1.msra.mxu0 %v584
    %656 = vmatprep.subr.mxu0 %v583
    %657 = vmatpush1.msra.mxu0 %v582
    %658 = vmatprep.subr.mxu0 %v581
    %659 = vmatpush1.msra.mxu0 %v580
    %660 = vmatprep.subr.mxu0 %v579
    %661 = vmatpush1.msra.mxu0 %v578
    %662 = vmatprep.subr.mxu0 %v577
    %663 = vmatpush1.msra.mxu0 %v576
    %664 = vmatprep.subr.mxu0 %v575
    %665 = vmatpush1.msra.mxu0 %v574
    %666 = vmatprep.subr.mxu0 %v573
    %667 = vmatpush1.msra.mxu0 %v572
    %668 = vmatprep.subr.mxu0 %v571
    %669 = vmatpush1.msra.mxu0 %v570
    %670 = vmatprep.subr.mxu0 %v569
    %671 = vmatpush1.msra.mxu0 %v568
    %672 = vmatprep.subr.mxu0 %v567
    %673 = vmatpush1.msra.mxu0 %v566
    %674 = vmatprep.subr.mxu0 %v629
    %675 = vmatpush2.msra.mxu0 %v628
    %676 = vmatprep.subr.mxu0 %v627
    %677 = vmatpush2.msra.mxu0 %v626
    %678 = vmatprep.subr.mxu0 %v625
    %679 = vmatpush2.msra.mxu0 %v624
    %680 = vmatprep.subr.mxu0 %v623
    %681 = vmatpush2.msra.mxu0 %v622
    %682 = vmatprep.subr.mxu0 %v621
    %683 = vmatpush2.msra.mxu0 %v620
    %684 = vmatprep.subr.mxu0 %v619
    %685 = vmatpush2.msra.mxu0 %v618
    %686 = vmatprep.subr.mxu0 %v617
    %687 = vmatpush2.msra.mxu0 %v616
    %688 = vmatprep.subr.mxu0 %v615
    %689 = vmatpush2.msra.mxu0 %v614
    %690 = vmatprep.subr.mxu0 %v613
    %691 = vmatpush2.msra.mxu0 %v612
    %692 = vmatprep.subr.mxu0 %v611
    %693 = vmatpush2.msra.mxu0 %v610
    %694 = vmatprep.subr.mxu0 %v609
    %695 = vmatpush2.msra.mxu0 %v608
    %696 = vmatprep.subr.mxu0 %v607
    %697 = vmatpush2.msra.mxu0 %v606
    %698 = vmatprep.subr.mxu0 %v605
    %699 = vmatpush2.msra.mxu0 %v604
    %700 = vmatprep.subr.mxu0 %v603
    %701 = vmatpush2.msra.mxu0 %v602
    %702 = vmatprep.subr.mxu0 %v601
    %703 = vmatpush2.msra.mxu0 %v600
    %704 = vmatprep.subr.mxu0 %v599
    %705 = vmatpush2.msra.mxu0 %v598
    %706 = vmatprep.mubr.f32.mxu0 %v565
    %707 = vmatmul.mubr.f32.gmra.mxu0 %v564
    %v708 = vpop.f32.mrf.mxu0
    %v709 = vadd.f32 %v635, %v708
    %v710 = vpop.f32.mrf.mxu0
    %v711 = vadd.f32 %v639, %v710
    %712 = vdwg.mxu0
    %v713 = vmax.f32 %v709, 0.0
    %v714 = vmax.f32 %v711, 0.0
    %v715 = vld [vmem:[#allocation5] sm:$0xff]
    %v716 = vld [vmem:[#allocation5 + $0x8] sm:$0xff]
    %v717 = vld [vmem:[#allocation5 + $0x10] sm:$0xff]
    %v718 = vld [vmem:[#allocation5 + $0x18] sm:$0xff]
    %v719 = vld [vmem:[#allocation5 + $0x20] sm:$0xff]
    %v720 = vld [vmem:[#allocation5 + $0x28] sm:$0xff]
    %v721 = vld [vmem:[#allocation5 + $0x30] sm:$0xff]
    %v722 = vld [vmem:[#allocation5 + $0x38] sm:$0xff]
    %v723 = vld [vmem:[#allocation5 + $0x40] sm:$0xff]
    %v724 = vld [vmem:[#allocation5 + $0x48] sm:$0xff]
    %v725 = vld [vmem:[#allocation5 + $0x50] sm:$0xff]
    %v726 = vld [vmem:[#allocation5 + $0x58] sm:$0xff]
    %v727 = vld [vmem:[#allocation5 + $0x60] sm:$0xff]
    %v728 = vld [vmem:[#allocation5 + $0x68] sm:$0xff]
    %v729 = vld [vmem:[#allocation5 + $0x70] sm:$0xff]
    %v730 = vld [vmem:[#allocation5 + $0x78] sm:$0xff]
    %v731 = vld [vmem:[#allocation5 + $0x80] sm:$0xff]
    %v732 = vld [vmem:[#allocation5 + $0x88] sm:$0xff]
    %v733 = vld [vmem:[#allocation5 + $0x90] sm:$0xff]
    %v734 = vld [vmem:[#allocation5 + $0x98] sm:$0xff]
    %v735 = vld [vmem:[#allocation5 + $0xa0] sm:$0xff]
    %v736 = vld [vmem:[#allocation5 + $0xa8] sm:$0xff]
    %v737 = vld [vmem:[#allocation5 + $0xb0] sm:$0xff]
    %v738 = vld [vmem:[#allocation5 + $0xb8] sm:$0xff]
    %v739 = vld [vmem:[#allocation5 + $0xc0] sm:$0xff]
    %v740 = vld [vmem:[#allocation5 + $0xc8] sm:$0xff]
    %v741 = vld [vmem:[#allocation5 + $0xd0] sm:$0xff]
    %v742 = vld [vmem:[#allocation5 + $0xd8] sm:$0xff]
    %v743 = vld [vmem:[#allocation5 + $0xe0] sm:$0xff]
    %v744 = vld [vmem:[#allocation5 + $0xe8] sm:$0xff]
    %v745 = vld [vmem:[#allocation5 + $0xf0] sm:$0xff]
    %v746 = vld [vmem:[#allocation5 + $0xf8] sm:$0xff]
    %v747 = vld [vmem:[#allocation5 + $0x100] sm:$0xff]
    %v748 = vld [vmem:[#allocation5 + $0x108] sm:$0xff]
    %v749 = vld [vmem:[#allocation5 + $0x110] sm:$0xff]
    %v750 = vld [vmem:[#allocation5 + $0x118] sm:$0xff]
    %v751 = vld [vmem:[#allocation5 + $0x120] sm:$0xff]
    %v752 = vld [vmem:[#allocation5 + $0x128] sm:$0xff]
    %v753 = vld [vmem:[#allocation5 + $0x130] sm:$0xff]
    %v754 = vld [vmem:[#allocation5 + $0x138] sm:$0xff]
    %v755 = vld [vmem:[#allocation5 + $0x140] sm:$0xff]
    %v756 = vld [vmem:[#allocation5 + $0x148] sm:$0xff]
    %v757 = vld [vmem:[#allocation5 + $0x150] sm:$0xff]
    %v758 = vld [vmem:[#allocation5 + $0x158] sm:$0xff]
    %v759 = vld [vmem:[#allocation5 + $0x160] sm:$0xff]
    %v760 = vld [vmem:[#allocation5 + $0x168] sm:$0xff]
    %v761 = vld [vmem:[#allocation5 + $0x170] sm:$0xff]
    %v762 = vld [vmem:[#allocation5 + $0x178] sm:$0xff]
    %v763 = vld [vmem:[#allocation5 + $0x180] sm:$0xff]
    %v764 = vld [vmem:[#allocation5 + $0x188] sm:$0xff]
    %v765 = vld [vmem:[#allocation5 + $0x190] sm:$0xff]
    %v766 = vld [vmem:[#allocation5 + $0x198] sm:$0xff]
    %v767 = vld [vmem:[#allocation5 + $0x1a0] sm:$0xff]
    %v768 = vld [vmem:[#allocation5 + $0x1a8] sm:$0xff]
    %v769 = vld [vmem:[#allocation5 + $0x1b0] sm:$0xff]
    %v770 = vld [vmem:[#allocation5 + $0x1b8] sm:$0xff]
    %v771 = vld [vmem:[#allocation5 + $0x1c0] sm:$0xff]
    %v772 = vld [vmem:[#allocation5 + $0x1c8] sm:$0xff]
    %v773 = vld [vmem:[#allocation5 + $0x1d0] sm:$0xff]
    %v774 = vld [vmem:[#allocation5 + $0x1d8] sm:$0xff]
    %v775 = vld [vmem:[#allocation5 + $0x1e0] sm:$0xff]
    %v776 = vld [vmem:[#allocation5 + $0x1e8] sm:$0xff]
    %v777 = vld [vmem:[#allocation5 + $0x1f0] sm:$0xff]
    %v778 = vld [vmem:[#allocation5 + $0x1f8] sm:$0xff]
    %v779 = vld [vmem:[%s6] sm:$0x3]
    %v781 = vlaneseq
    %v782 = vshrl.u32 %v781, 7
    %v783 = vsub.s32 0, %v782
    %v784 = vrot.slane %v779, %v783
    %v785 = vlaneseq
    %v786 = vshrl.u32 %v785, 7
    %v787 = vsub.s32 1, %v786
    %v788 = vrot.slane %v779, %v787
    %791 = vmatprep.subr.mxu0 %v746
    %792 = vmatpush1.msra.mxu0 %v745
    %793 = vmatprep.subr.mxu0 %v744
    %794 = vmatpush1.msra.mxu0 %v743
    %795 = vmatprep.subr.mxu0 %v742
    %796 = vmatpush1.msra.mxu0 %v741
    %797 = vmatprep.subr.mxu0 %v740
    %798 = vmatpush1.msra.mxu0 %v739
    %799 = vmatprep.subr.mxu0 %v738
    %800 = vmatpush1.msra.mxu0 %v737
    %801 = vmatprep.subr.mxu0 %v736
    %802 = vmatpush1.msra.mxu0 %v735
    %803 = vmatprep.subr.mxu0 %v734
    %804 = vmatpush1.msra.mxu0 %v733
    %805 = vmatprep.subr.mxu0 %v732
    %806 = vmatpush1.msra.mxu0 %v731
    %807 = vmatprep.subr.mxu0 %v730
    %808 = vmatpush1.msra.mxu0 %v729
    %809 = vmatprep.subr.mxu0 %v728
    %810 = vmatpush1.msra.mxu0 %v727
    %811 = vmatprep.subr.mxu0 %v726
    %812 = vmatpush1.msra.mxu0 %v725
    %813 = vmatprep.subr.mxu0 %v724
    %814 = vmatpush1.msra.mxu0 %v723
    %815 = vmatprep.subr.mxu0 %v722
    %816 = vmatpush1.msra.mxu0 %v721
    %817 = vmatprep.subr.mxu0 %v720
    %818 = vmatpush1.msra.mxu0 %v719
    %819 = vmatprep.subr.mxu0 %v718
    %820 = vmatpush1.msra.mxu0 %v717
    %821 = vmatprep.subr.mxu0 %v716
    %822 = vmatpush1.msra.mxu0 %v715
    %823 = vmatprep.subr.mxu0 %v778
    %824 = vmatpush2.msra.mxu0 %v777
    %825 = vmatprep.subr.mxu0 %v776
    %826 = vmatpush2.msra.mxu0 %v775
    %827 = vmatprep.subr.mxu0 %v774
    %828 = vmatpush2.msra.mxu0 %v773
    %829 = vmatprep.subr.mxu0 %v772
    %830 = vmatpush2.msra.mxu0 %v771
    %831 = vmatprep.subr.mxu0 %v770
    %832 = vmatpush2.msra.mxu0 %v769
    %833 = vmatprep.subr.mxu0 %v768
    %834 = vmatpush2.msra.mxu0 %v767
    %835 = vmatprep.subr.mxu0 %v766
    %836 = vmatpush2.msra.mxu0 %v765
    %837 = vmatprep.subr.mxu0 %v764
    %838 = vmatpush2.msra.mxu0 %v763
    %839 = vmatprep.subr.mxu0 %v762
    %840 = vmatpush2.msra.mxu0 %v761
    %841 = vmatprep.subr.mxu0 %v760
    %842 = vmatpush2.msra.mxu0 %v759
    %843 = vmatprep.subr.mxu0 %v758
    %844 = vmatpush2.msra.mxu0 %v757
    %845 = vmatprep.subr.mxu0 %v756
    %846 = vmatpush2.msra.mxu0 %v755
    %847 = vmatprep.subr.mxu0 %v754
    %848 = vmatpush2.msra.mxu0 %v753
    %849 = vmatprep.subr.mxu0 %v752
    %850 = vmatpush2.msra.mxu0 %v751
    %851 = vmatprep.subr.mxu0 %v750
    %852 = vmatpush2.msra.mxu0 %v749
    %853 = vmatprep.subr.mxu0 %v748
    %854 = vmatpush2.msra.mxu0 %v747
    %855 = vmatprep.mubr.f32.mxu0 %v714
    %856 = vmatmul.mubr.f32.gmra.mxu0 %v713
    %v857 = vpop.f32.mrf.mxu0
    %v858 = vadd.f32 %v784, %v857
    %v859 = vpop.f32.mrf.mxu0
    %v860 = vadd.f32 %v788, %v859
    %861 = vdwg.mxu0
    %v862 = vmax.f32 %v858, 0.0
    %v863 = vmax.f32 %v860, 0.0
    %v864 = vld [vmem:[%s7] sm:$0xff]
    %v865 = vld [vmem:[%s7 + $0x8] sm:$0xff]
    %v866 = vld [vmem:[%s7 + $0x10] sm:$0xff]
    %v867 = vld [vmem:[%s7 + $0x18] sm:$0xff]
    %v868 = vld [vmem:[%s7 + $0x20] sm:$0xff]
    %v869 = vld [vmem:[%s7 + $0x28] sm:$0xff]
    %v870 = vld [vmem:[%s7 + $0x30] sm:$0xff]
    %v871 = vld [vmem:[%s7 + $0x38] sm:$0xff]
    %v872 = vld [vmem:[%s7 + $0x40] sm:$0xff]
    %v873 = vld [vmem:[%s7 + $0x48] sm:$0xff]
    %v874 = vld [vmem:[%s7 + $0x50] sm:$0xff]
    %v875 = vld [vmem:[%s7 + $0x58] sm:$0xff]
    %v876 = vld [vmem:[%s7 + $0x60] sm:$0xff]
    %v877 = vld [vmem:[%s7 + $0x68] sm:$0xff]
    %v878 = vld [vmem:[%s7 + $0x70] sm:$0xff]
    %v879 = vld [vmem:[%s7 + $0x78] sm:$0xff]
    %v880 = vld [vmem:[%s7 + $0x80] sm:$0xff]
    %v881 = vld [vmem:[%s7 + $0x88] sm:$0xff]
    %v882 = vld [vmem:[%s7 + $0x90] sm:$0xff]
    %v883 = vld [vmem:[%s7 + $0x98] sm:$0xff]
    %v884 = vld [vmem:[%s7 + $0xa0] sm:$0xff]
    %v885 = vld [vmem:[%s7 + $0xa8] sm:$0xff]
    %v886 = vld [vmem:[%s7 + $0xb0] sm:$0xff]
    %v887 = vld [vmem:[%s7 + $0xb8] sm:$0xff]
    %v888 = vld [vmem:[%s7 + $0xc0] sm:$0xff]
    %v889 = vld [vmem:[%s7 + $0xc8] sm:$0xff]
    %v890 = vld [vmem:[%s7 + $0xd0] sm:$0xff]
    %v891 = vld [vmem:[%s7 + $0xd8] sm:$0xff]
    %v892 = vld [vmem:[%s7 + $0xe0] sm:$0xff]
    %v893 = vld [vmem:[%s7 + $0xe8] sm:$0xff]
    %v894 = vld [vmem:[%s7 + $0xf0] sm:$0xff]
    %v895 = vld [vmem:[%s7 + $0xf8] sm:$0xff]
    %v896 = vld [vmem:[%s8] sm:$0x1]
    %v898 = vlaneseq
    %v899 = vshrl.u32 %v898, 7
    %v900 = vsub.s32 0, %v899
    %v901 = vrot.slane %v896, %v900
    %903 = vmatprep.subr.mxu0 0.0
    %904 = vmatpush1.msra.mxu0 %v879
    %905 = vmatprep.subr.mxu0 0.0
    %906 = vmatpush1.msra.mxu0 %v878
    %907 = vmatprep.subr.mxu0 0.0
    %908 = vmatpush1.msra.mxu0 %v877
    %909 = vmatprep.subr.mxu0 0.0
    %910 = vmatpush1.msra.mxu0 %v876
    %911 = vmatprep.subr.mxu0 0.0
    %912 = vmatpush1.msra.mxu0 %v875
    %913 = vmatprep.subr.mxu0 0.0
    %914 = vmatpush1.msra.mxu0 %v874
    %915 = vmatprep.subr.mxu0 0.0
    %916 = vmatpush1.msra.mxu0 %v873
    %917 = vmatprep.subr.mxu0 0.0
    %918 = vmatpush1.msra.mxu0 %v872
    %919 = vmatprep.subr.mxu0 0.0
    %920 = vmatpush1.msra.mxu0 %v871
    %921 = vmatprep.subr.mxu0 0.0
    %922 = vmatpush1.msra.mxu0 %v870
    %923 = vmatprep.subr.mxu0 0.0
    %924 = vmatpush1.msra.mxu0 %v869
    %925 = vmatprep.subr.mxu0 0.0
    %926 = vmatpush1.msra.mxu0 %v868
    %927 = vmatprep.subr.mxu0 0.0
    %928 = vmatpush1.msra.mxu0 %v867
    %929 = vmatprep.subr.mxu0 0.0
    %930 = vmatpush1.msra.mxu0 %v866
    %931 = vmatprep.subr.mxu0 0.0
    %932 = vmatpush1.msra.mxu0 %v865
    %933 = vmatprep.subr.mxu0 0.0
    %934 = vmatpush1.msra.mxu0 %v864
    %935 = vmatprep.subr.mxu0 0.0
    %936 = vmatpush2.msra.mxu0 %v895
    %937 = vmatprep.subr.mxu0 0.0
    %938 = vmatpush2.msra.mxu0 %v894
    %939 = vmatprep.subr.mxu0 0.0
    %940 = vmatpush2.msra.mxu0 %v893
    %941 = vmatprep.subr.mxu0 0.0
    %942 = vmatpush2.msra.mxu0 %v892
    %943 = vmatprep.subr.mxu0 0.0
    %944 = vmatpush2.msra.mxu0 %v891
    %945 = vmatprep.subr.mxu0 0.0
    %946 = vmatpush2.msra.mxu0 %v890
    %947 = vmatprep.subr.mxu0 0.0
    %948 = vmatpush2.msra.mxu0 %v889
    %949 = vmatprep.subr.mxu0 0.0
    %950 = vmatpush2.msra.mxu0 %v888
    %951 = vmatprep.subr.mxu0 0.0
    %952 = vmatpush2.msra.mxu0 %v887
    %953 = vmatprep.subr.mxu0 0.0
    %954 = vmatpush2.msra.mxu0 %v886
    %955 = vmatprep.subr.mxu0 0.0
    %956 = vmatpush2.msra.mxu0 %v885
    %957 = vmatprep.subr.mxu0 0.0
    %958 = vmatpush2.msra.mxu0 %v884
    %959 = vmatprep.subr.mxu0 0.0
    %960 = vmatpush2.msra.mxu0 %v883
    %961 = vmatprep.subr.mxu0 0.0
    %962 = vmatpush2.msra.mxu0 %v882
    %963 = vmatprep.subr.mxu0 0.0
    %964 = vmatpush2.msra.mxu0 %v881
    %965 = vmatprep.subr.mxu0 0.0
    %966 = vmatpush2.msra.mxu0 %v880
    %967 = vmatprep.mubr.f32.mxu0 %v863
    %968 = vmatmul.mubr.f32.gmra.mxu0 %v862
    %v969 = vpop.f32.mrf.mxu0
    %v970 = vadd.f32 %v901, %v969
    %v971 = vpop.f32.mrf.mxu0
    %972 = vdwg.mxu0
    %973 = vst [vmem:[#allocation7] sm:$0xff] %v970
    // Predicated region
    $region46: #{mlp_forward.1} parent=1 // pred_check
      _
    $region47: #{mlp_forward.1} parent=1 // pred_check_branch
      %975 = sbr.rel (0) target = $region49
    $region48: #{mlp_forward.1} parent=1 // pred_region
      %s977 = ssub.s32 128, 128
      %978 = vsyncadd [#allocation4], %s977
      %s980 = sshll.u32 [#allocation7], 4
      %s981 = int_to_ptr.vmem [resolvable:$true] %s980
      %983 = dma.vmem_to_hbm [thread:$0]  %s981, 128, %s9, [#allocation4]
    $region49: #{mlp_forward.1} parent=1 // pred_fallthru
      _
    // Predicated region
    $region50: #{mlp_forward.1} parent=1 // pred_check
      _
    $region51: #{mlp_forward.1} parent=1 // pred_check_branch
      %985 = sbr.rel (0) target = $region53
    $region52: #{mlp_forward.1} parent=1 // pred_region
      %986 = dma.done [#allocation4], 128
    $region53: #{mlp_forward.1} parent=1 // pred_fallthru
      _
    %987 = vsyncpa [#allocation3], 1
    %988 = vsyncpa [#allocation6], 1
    %989 = vsyncpa [#allocation4], 1

</llo_original>
